<compile_context>
chip_gen: v6e
topology: v6e:2x2x1
jax: 0.10.0
libtpu: 0.0.40
codegen_flags: <defaults>
</compile_context>

<pallas_src>
import math
from functools import partial

import jax
import jax.numpy as jnp
from jax.experimental import pallas as pl
from jax.experimental.pallas import tpu as pltpu


def _round_up(x, m):
    return ((x + m - 1) // m) * m


def _critic_kernel(state_ref, action_ref, w_ref, v_ref, o_ref, *,
                   n_input, h1, h2, w2_row0):
    # Fused .float() + concat: state||action built in-register, one layer-1 dot.
    s = state_ref[...].astype(jnp.float32)            # [blk, sd]
    a = action_ref[...].astype(jnp.float32)           # [blk, ad]
    x = jnp.concatenate([s, a], axis=-1)               # [blk, n_input]
    x_bf = x.astype(jnp.bfloat16)

    # Sublane-aligned ref slices of the packed bf16 weight slab.
    w1 = w_ref[:n_input, :h1]                           # [n_input, h1] bf16
    w2 = w_ref[w2_row0:w2_row0 + h1, :h2]               # [h1, h2]      bf16

    # f32 vector slab, each piece at an 8-aligned row, lane offset 0.
    b1 = v_ref[0:1, :h1]                                # [1, h1]
    b2 = v_ref[8:9, :h2]                                # [1, h2]
    w3r = v_ref[16:17, :h2]                             # [1, h2]
    b3 = v_ref[24:25, 0:1]                              # [1, 1]

    # Layer 1: single [blk, n_input] x [n_input, h1] MXU dot, f32 accumulation.
    z1 = jnp.dot(x_bf, w1, preferred_element_type=jnp.float32) + b1
    f1 = jnp.maximum(z1, 0.0)                           # ReLU (f32, VPU)

    # Layer 2.
    z2 = jnp.dot(f1.astype(jnp.bfloat16), w2,
                 preferred_element_type=jnp.float32) + b2
    f2 = jnp.maximum(z2, 0.0)                           # ReLU (f32, VPU)

    # Output layer (n_output == 1): VPU broadcast-mul + lane reduction.
    q = jnp.sum(f2 * w3r, axis=-1, keepdims=True) + b3  # [blk, 1]
    o_ref[...] = q.astype(o_ref.dtype)


def pack_critic_params(params, state_dim, action_dim, *,
                       weight_dtype=jnp.bfloat16):
    """Pack (w1,b1,w2,b2,w3,b3) into 2 DMA slabs with aligned sub-blocks.

    w1: [n_input, h1], w2: [h1, h2], w3: [h2, 1] (all [in, out] layout).
      slab_w (weight_dtype): rows [0, n_input) = w1, rows [w2_row0, +h1) = w2,
                             w2_row0 16-aligned (bf16 sublane packing).
      slab_v (f32):          row 0 = b1, row 8 = b2, row 16 = w3^T, row 24 = b3.
    """
    w1, b1, w2, b2, w3, b3 = params
    n_input, h1 = w1.shape
    _, h2 = w2.shape
    assert w3.shape == (h2, 1), "packed path supports n_output == 1 (critic)"
    assert n_input == state_dim + action_dim

    w2_row0 = _round_up(n_input, 16)
    lanes = max(h1, h2)

    slab_w = jnp.zeros((w2_row0 + h1, lanes), weight_dtype)
    slab_w = slab_w.at[:n_input, :h1].set(w1.astype(weight_dtype))
    slab_w = slab_w.at[w2_row0:w2_row0 + h1, :h2].set(w2.astype(weight_dtype))

    slab_v = jnp.zeros((32, lanes), jnp.float32)
    slab_v = slab_v.at[0, :h1].set(b1.reshape(h1).astype(jnp.float32))
    slab_v = slab_v.at[8, :h2].set(b2.reshape(h2).astype(jnp.float32))
    slab_v = slab_v.at[16, :h2].set(w3.reshape(h2).astype(jnp.float32))
    slab_v = slab_v.at[24, 0].set(jnp.asarray(b3, jnp.float32).reshape(()))

    meta = dict(n_input=n_input, h1=h1, h2=h2, w2_row0=w2_row0)
    return slab_w, slab_v, meta


def critic_forward(state, action, slab_w, slab_v, meta, *, block_b=1024):
    """Equivalent of CriticNetwork.forward(state, action)."""
    B, sd = state.shape
    ad = action.shape[1]
    n_input, h1, h2, w2_row0 = (meta["n_input"], meta["h1"],
                                meta["h2"], meta["w2_row0"])
    assert n_input == sd + ad

    # Batch tiling: one full block for small B; otherwise blocks of at most
    # block_b rows, rebalanced (16-aligned) so grid steps get equal work and
    # the grid has >= 2 steps when B > block_b (both TCs busy on v7x).
    if B <= block_b:
        blk = B
    else:
        steps = pl.cdiv(B, block_b)
        blk = min(block_b, _round_up(pl.cdiv(B, steps), 16))
    grid = (pl.cdiv(B, blk),)

    kernel = partial(_critic_kernel, n_input=n_input, h1=h1, h2=h2,
                     w2_row0=w2_row0)

    q = pl.pallas_call(
        kernel,
        out_shape=jax.ShapeDtypeStruct((B, 1), jnp.float32),
        grid_spec=pltpu.PrefetchScalarGridSpec(
            num_scalar_prefetch=0,
            grid=grid,
            in_specs=[
                pl.BlockSpec((blk, sd), lambda i: (i, 0)),     # state tile
                pl.BlockSpec((blk, ad), lambda i: (i, 0)),     # action tile
                pl.BlockSpec(slab_w.shape, lambda i: (0, 0)),  # VMEM-resident
                pl.BlockSpec(slab_v.shape, lambda i: (0, 0)),  # VMEM-resident
            ],
            out_specs=pl.BlockSpec((blk, 1), lambda i: (i, 0)),
        ),
        compiler_params=pltpu.CompilerParams(
            dimension_semantics=("parallel",)),
        # NOTE: raise vmem_limit_bytes here if block_b is swept above ~4096.
    )(state, action, slab_w, slab_v)

    # torch.squeeze(q): drop all size-1 dims.
    return jnp.squeeze(q)


def init_critic_params(key, n_input, n_features, n_output):
    """Deterministic init matching the PyTorch module's __init__.

    Weights: xavier_uniform with gain('relu')=sqrt(2) for h1/h2 and
    gain('linear')=1 for h3.  Biases: nn.Linear default
    uniform(-1/sqrt(fan_in), 1/sqrt(fan_in)).  Weights returned as [in, out].
    """
    dims = [(n_input, n_features[0]), (n_features[0], n_features[1]),
            (n_features[1], n_output)]
    gains = [math.sqrt(2.0), math.sqrt(2.0), 1.0]
    params = []
    for (fan_in, fan_out), gain in zip(dims, gains):
        key, kw, kb = jax.random.split(key, 3)
        w_bound = gain * math.sqrt(6.0 / (fan_in + fan_out))
        w = jax.random.uniform(kw, (fan_in, fan_out), jnp.float32,
                               minval=-w_bound, maxval=w_bound)
        b_bound = 1.0 / math.sqrt(fan_in)
        b = jax.random.uniform(kb, (1, fan_out), jnp.float32,
                               minval=-b_bound, maxval=b_bound)
        params.extend([w, b])
    return tuple(params)


def _reference_f32(params, state, action):
    """Faithful f32 reference (same math as the torch module)."""
    w1, b1, w2, b2, w3, b3 = params
    x = jnp.concatenate([state.astype(jnp.float32),
                         action.astype(jnp.float32)], axis=1)
    f1 = jnp.maximum(x @ w1 + b1, 0.0)
    f2 = jnp.maximum(f1 @ w2 + b2, 0.0)
    return jnp.squeeze(f2 @ w3 + b3)


def _reference_bf16_emulated(params, state, action):
    """Reference that mirrors the kernel's bf16 quantization points."""
    w1, b1, w2, b2, w3, b3 = params
    bf = lambda t: t.astype(jnp.bfloat16).astype(jnp.float32)
    x = bf(jnp.concatenate([state.astype(jnp.float32),
                            action.astype(jnp.float32)], axis=1))
    f1 = jnp.maximum(x @ bf(w1) + b1, 0.0)
    f2 = jnp.maximum(bf(f1) @ bf(w2) + b2, 0.0)
    return jnp.squeeze(f2 @ w3 + b3)


if __name__ == "__main__":
    key = jax.random.PRNGKey(0)

    # Small shapes consistent with the module:
    # input_shape[-1] = state_dim + action_dim (concat along dim=1).
    batch = 2
    state_dim = 20
    action_dim = 12
    n_input = state_dim + action_dim          # 32
    n_features = (32, 32)
    n_output = 1                              # critic Q-value

    key, k_params, k_state, k_action = jax.random.split(key, 4)
    params = init_critic_params(k_params, n_input, n_features, n_output)
    slab_w, slab_v, meta = pack_critic_params(params, state_dim, action_dim)

    state = jax.random.normal(k_state, (batch, state_dim), jnp.float32)
    action = jax.random.normal(k_action, (batch, action_dim), jnp.float32)

    q = critic_forward(state, action, slab_w, slab_v, meta)
    jax.block_until_ready(q)
    assert q.shape == (batch,)

    # Tight check against a bf16-quantization-emulating reference, plus a
    # looser check against the exact f32 torch-style math.
    q_ref_q = _reference_bf16_emulated(params, state, action)
    q_ref_f = _reference_f32(params, state, action)
    assert jnp.allclose(q, q_ref_q, atol=2e-3, rtol=2e-3)
    assert jnp.allclose(q, q_ref_f, atol=5e-2, rtol=5e-2)

    # Larger, gridded run: 2 batch blocks (both TCs on v7x), partial final
    # block exercises Pallas block clamping, bf16 producer inputs halve the
    # activation HBM traffic.
    B2 = 1234
    key, k_s2, k_a2 = jax.random.split(key, 3)
    state2 = jax.random.normal(k_s2, (B2, state_dim),
                               jnp.float32).astype(jnp.bfloat16)
    action2 = jax.random.normal(k_a2, (B2, action_dim),
                                jnp.float32).astype(jnp.bfloat16)
    q2 = critic_forward(state2, action2, slab_w, slab_v, meta, block_b=1024)
    jax.block_until_ready(q2)
    assert q2.shape == (B2,)
    q2_ref = _reference_bf16_emulated(params, state2, action2)
    assert jnp.allclose(q2, q2_ref, atol=2e-3, rtol=2e-3)

    print("KERNEL_OK")
</pallas_src>

<mosaic_0001>
module attributes {stable_mosaic.version = 11 : i64} {
  func.func @_critic_kernel(%arg0: i32, %arg1: memref<2x20xf32, #tpu.memory_space<vmem>>, %arg2: memref<2x12xf32, #tpu.memory_space<vmem>>, %arg3: memref<64x32xbf16, #tpu.memory_space<vmem>>, %arg4: memref<32x32xf32, #tpu.memory_space<vmem>>, %arg5: memref<2x1xf32, #tpu.memory_space<vmem>>) attributes {dimension_semantics = [#tpu.dimension_semantics<parallel>], iteration_bounds = array<i64: 1>, scalar_prefetch = 0 : i64, scratch_operands = 0 : i64, tpu.core_type = #tpu.core_type<tc>, window_params = [{transform_indices = @transform_0, window_bounds = array<i64: 2, 20>}, {transform_indices = @transform_1, window_bounds = array<i64: 2, 12>}, {pipeline_mode = #tpu.pipeline_mode<synchronous>, transform_indices = @transform_2, window_bounds = array<i64: 64, 32>}, {pipeline_mode = #tpu.pipeline_mode<synchronous>, transform_indices = @transform_3, window_bounds = array<i64: 32, 32>}, {transform_indices = @transform_4, window_bounds = array<i64: 2, 1>}]} {
    %c0 = arith.constant 0 : index
    %c0_0 = arith.constant 0 : index
    %0 = vector.load %arg1[%c0, %c0_0] : memref<2x20xf32, #tpu.memory_space<vmem>>, vector<2x20xf32>
    %c0_1 = arith.constant 0 : index
    %c0_2 = arith.constant 0 : index
    %1 = vector.load %arg2[%c0_1, %c0_2] : memref<2x12xf32, #tpu.memory_space<vmem>>, vector<2x12xf32>
    %2 = tpu.concatenate %0, %1 in 1 : vector<2x20xf32>, vector<2x12xf32> -> vector<2x32xf32>
    %3 = arith.truncf %2 : vector<2x32xf32> to vector<2x32xbf16>
    %c0_3 = arith.constant 0 : index
    %c0_4 = arith.constant 0 : index
    %4 = vector.load %arg3[%c0_3, %c0_4] : memref<64x32xbf16, #tpu.memory_space<vmem>>, vector<32x32xbf16>
    %c32 = arith.constant 32 : index
    %c0_5 = arith.constant 0 : index
    %5 = vector.load %arg3[%c32, %c0_5] : memref<64x32xbf16, #tpu.memory_space<vmem>>, vector<32x32xbf16>
    %c0_6 = arith.constant 0 : index
    %c0_7 = arith.constant 0 : index
    %6 = vector.load %arg4[%c0_6, %c0_7] : memref<32x32xf32, #tpu.memory_space<vmem>>, vector<1x32xf32>
    %c8 = arith.constant 8 : index
    %c0_8 = arith.constant 0 : index
    %7 = vector.load %arg4[%c8, %c0_8] : memref<32x32xf32, #tpu.memory_space<vmem>>, vector<1x32xf32>
    %c16 = arith.constant 16 : index
    %c0_9 = arith.constant 0 : index
    %8 = vector.load %arg4[%c16, %c0_9] : memref<32x32xf32, #tpu.memory_space<vmem>>, vector<1x32xf32>
    %c24 = arith.constant 24 : index
    %c0_10 = arith.constant 0 : index
    %9 = vector.load %arg4[%c24, %c0_10] : memref<32x32xf32, #tpu.memory_space<vmem>>, vector<1x1xf32>
    %cst = arith.constant dense<0.000000e+00> : vector<2x32xf32>
    %10 = tpu.matmul %3, %4, %cst {dimension_numbers = #tpu.dot_dimension_numbers<[1], [0], [0], [1], [0, 0, 1, 1], [], []>} : vector<2x32xbf16>, vector<32x32xbf16>, vector<2x32xf32> -> vector<2x32xf32>
    %11 = vector.broadcast %6 : vector<1x32xf32> to vector<2x32xf32>
    %12 = arith.addf %10, %11 : vector<2x32xf32>
    %cst_11 = arith.constant 0.000000e+00 : f32
    %13 = vector.broadcast %cst_11 : f32 to vector<2x32xf32>
    %14 = arith.maximumf %12, %13 : vector<2x32xf32>
    %15 = arith.truncf %14 : vector<2x32xf32> to vector<2x32xbf16>
    %cst_12 = arith.constant dense<0.000000e+00> : vector<2x32xf32>
    %16 = tpu.matmul %15, %5, %cst_12 {dimension_numbers = #tpu.dot_dimension_numbers<[1], [0], [0], [1], [0, 0, 1, 1], [], []>} : vector<2x32xbf16>, vector<32x32xbf16>, vector<2x32xf32> -> vector<2x32xf32>
    %17 = vector.broadcast %7 : vector<1x32xf32> to vector<2x32xf32>
    %18 = arith.addf %16, %17 : vector<2x32xf32>
    %cst_13 = arith.constant 0.000000e+00 : f32
    %19 = vector.broadcast %cst_13 : f32 to vector<2x32xf32>
    %20 = arith.maximumf %18, %19 : vector<2x32xf32>
    %21 = vector.broadcast %8 : vector<1x32xf32> to vector<2x32xf32>
    %22 = arith.mulf %20, %21 : vector<2x32xf32>
    %cst_14 = arith.constant dense<0.000000e+00> : vector<2xf32>
    %23 = vector.multi_reduction <add>, %22, %cst_14 [1] : vector<2x32xf32> to vector<2xf32>
    %24 = vector.shape_cast %23 : vector<2xf32> to vector<2x1xf32>
    %25 = vector.broadcast %9 : vector<1x1xf32> to vector<2x1xf32>
    %26 = arith.addf %24, %25 : vector<2x1xf32>
    %c0_15 = arith.constant 0 : index
    %c0_16 = arith.constant 0 : index
    %27 = vector.load %arg5[%c0_15, %c0_16] : memref<2x1xf32, #tpu.memory_space<vmem>>, vector<2x1xf32>
    tpu.vector_store %arg5[%c0_15, %c0_16], %26 {strides = array<i32>} : memref<2x1xf32, #tpu.memory_space<vmem>>, vector<2x1xf32>,
    return
  }
  func.func @transform_0(%arg0: i32) -> (i32, i32) {
    %c0_i32 = arith.constant 0 : i32
    %c0_i32_0 = arith.constant 0 : i32
    return %arg0, %c0_i32 : i32, i32
  }
  func.func @transform_1(%arg0: i32) -> (i32, i32) {
    %c0_i32 = arith.constant 0 : i32
    %c0_i32_0 = arith.constant 0 : i32
    return %arg0, %c0_i32 : i32, i32
  }
  func.func @transform_2(%arg0: i32) -> (i32, i32) {
    %c0_i32 = arith.constant 0 : i32
    %c0_i32_0 = arith.constant 0 : i32
    %c0_i32_1 = arith.constant 0 : i32
    return %c0_i32, %c0_i32_0 : i32, i32
  }
  func.func @transform_3(%arg0: i32) -> (i32, i32) {
    %c0_i32 = arith.constant 0 : i32
    %c0_i32_0 = arith.constant 0 : i32
    %c0_i32_1 = arith.constant 0 : i32
    return %c0_i32, %c0_i32_0 : i32, i32
  }
  func.func @transform_4(%arg0: i32) -> (i32, i32) {
    %c0_i32 = arith.constant 0 : i32
    %c0_i32_0 = arith.constant 0 : i32
    return %arg0, %c0_i32 : i32, i32
  }
}

</mosaic_0001>

<llo_original>
// kernel: tpu_custom_call.1
$region0: #{tpu_custom_call.1}
  #allocation0 [shape = 'u32[]', space=smem, size = 0x4, offset = 0x4, fixed_abs, tag = 'smem constant byte address 0x4 - core index']
  #allocation1 [shape = 'u32[144,128]{1,0:T(1,128)}', space=vmem, size = 0x12000, scoped, tag = 'internal scratch']
  %s0 = inlined_call_operand.vmem [shape: f32[2,20], index: 0, kind: input, shape index: {}]
  %s1 = inlined_call_operand.vmem [shape: f32[2,12], index: 1, kind: input, shape index: {}]
  %s2 = inlined_call_operand.vmem [shape: bf16[64,32], index: 2, kind: input, shape index: {}]
  %s3 = inlined_call_operand.vmem [shape: f32[32,32], index: 3, kind: input, shape index: {}]
  %s4 = inlined_call_operand.vmem [shape: f32[2,1], index: 4, kind: output, shape index: {}]
  %s5 = sld [smem:[#allocation0]]
  $region26: #{tpu_custom_call.1} parent=0
    _
  %s7 = ssub.s32 1, %s5
  %s8 = scalar_select 0, %s7, %s5
  // Predicated region
  $region2: #{tpu_custom_call.1} parent=0 // pred_check
    _
  $region3: #{tpu_custom_call.1} parent=0 // pred_check_branch
    %10 = sbr.rel (0) target = $region5
  $region4: #{tpu_custom_call.1} parent=0 // pred_region
    _
  $region5: #{tpu_custom_call.1} parent=0 // pred_fallthru
    _
  // Predicated region
  $region6: #{tpu_custom_call.1} parent=0 // pred_check
    _
  $region7: #{tpu_custom_call.1} parent=0 // pred_check_branch
    %12 = sbr.rel (0) target = $region9
  $region8: #{tpu_custom_call.1} parent=0 // pred_region
    _
  $region9: #{tpu_custom_call.1} parent=0 // pred_fallthru
    _
  // Predicated region
  $region10: #{tpu_custom_call.1} parent=0 // pred_check
    _
  $region11: #{tpu_custom_call.1} parent=0 // pred_check_branch
    %14 = sbr.rel (0) target = $region13
  $region12: #{tpu_custom_call.1} parent=0 // pred_region
    _
  $region13: #{tpu_custom_call.1} parent=0 // pred_fallthru
    _
  // Predicated region
  $region14: #{tpu_custom_call.1} parent=0 // pred_check
    _
  $region15: #{tpu_custom_call.1} parent=0 // pred_check_branch
    %16 = sbr.rel (0) target = $region17
  $region16: #{tpu_custom_call.1} parent=0 // pred_region
    _
  $region17: #{tpu_custom_call.1} parent=0 // pred_fallthru
    _
  %v18 = vld [vmem:[%s0] sm:$0x3]
  %v19 = vld [vmem:[%s1] sm:$0x3]
  %21 = vrot.lane.b32.xlu0 %v19, 20
  %v22 = vpop.permute.xlu0 %21
  %vm24 = vcmask 162816
  %v25 = vsel %vm24, %v18, %v22
  %v26 = vpack.c.bf16 %v25, %v25
  %v27 = vld [vmem:[%s2] sm:$0xf]
  %v28 = vld [vmem:[%s2 + $0x4] sm:$0xf]
  %v29 = vld [vmem:[%s2 + $0x8] sm:$0xf]
  %v30 = vld [vmem:[%s2 + $0xc] sm:$0xf]
  %v31 = vld [vmem:[%s2 + $0x10] sm:$0xf]
  %v32 = vld [vmem:[%s2 + $0x14] sm:$0xf]
  %v33 = vld [vmem:[%s2 + $0x18] sm:$0xf]
  %v34 = vld [vmem:[%s2 + $0x1c] sm:$0xf]
  %v35 = vld [vmem:[%s3] sm:$0x1]
  %v36 = vld [vmem:[%s3 + $0x8] sm:$0x1]
  %v37 = vld [vmem:[%s3 + $0x10] sm:$0x1]
  %v38 = vld [vmem:[%s3 + $0x18] sm:$0x1]
  %v39 = vlaneseq
  %v40 = vshrl.u32 %v39, 7
  %v41 = vsub.s32 0, %v40
  %v42 = vrot.slane %v35, %v41
  %v47 = vunpack.c.l.b16 %v27
  %v48 = vunpack.c.l.b16 %v28
  %v49 = vunpack.c.l.b16 %v29
  %v50 = vunpack.c.l.b16 %v30
  %v51 = vpack.c.b16 %v48, %v47
  %v52 = vpack.c.b16 %v50, %v49
  %vm55 = vcmask 261120
  %v57 = vsel %vm55, %v26, 0
  %59 = vmatprep.subr.bf16.mxu0 0
  %60 = vmatpush1.bf16.msra.mxu0 0
  %61 = vmatprep.subr.bf16.mxu0 0
  %62 = vmatpush1.bf16.msra.mxu0 0
  %63 = vmatprep.subr.bf16.mxu0 0
  %64 = vmatpush1.bf16.msra.mxu0 0
  %65 = vmatprep.subr.bf16.mxu0 0
  %66 = vmatpush1.bf16.msra.mxu0 0
  %67 = vmatprep.subr.bf16.mxu0 0
  %68 = vmatpush1.bf16.msra.mxu0 0
  %69 = vmatprep.subr.bf16.mxu0 0
  %70 = vmatpush1.bf16.msra.mxu0 0
  %71 = vmatprep.subr.bf16.mxu0 0
  %72 = vmatpush1.bf16.msra.mxu0 %v52
  %73 = vmatprep.subr.bf16.mxu0 0
  %74 = vmatpush1.bf16.msra.mxu0 %v51
  %75 = vmatprep.subr.bf16.mxu0 0
  %76 = vmatpush2.bf16.msra.mxu0 0
  %77 = vmatprep.subr.bf16.mxu0 0
  %78 = vmatpush2.bf16.msra.mxu0 0
  %79 = vmatprep.subr.bf16.mxu0 0
  %80 = vmatpush2.bf16.msra.mxu0 0
  %81 = vmatprep.subr.bf16.mxu0 0
  %82 = vmatpush2.bf16.msra.mxu0 0
  %83 = vmatprep.subr.bf16.mxu0 0
  %84 = vmatpush2.bf16.msra.mxu0 0
  %85 = vmatprep.subr.bf16.mxu0 0
  %86 = vmatpush2.bf16.msra.mxu0 0
  %87 = vmatprep.subr.bf16.mxu0 0
  %88 = vmatpush2.bf16.msra.mxu0 0
  %89 = vmatprep.subr.bf16.mxu0 0
  %90 = vmatpush2.bf16.msra.mxu0 0
  %91 = vmatprep.mubr.bf16.mxu0 0
  %92 = vmatmul.mubr.bf16.gmra.mxu0 %v57
  %v93 = vpop.f32.mrf.mxu0
  %v94 = vadd.f32 %v42, %v93
  %v95 = vpop.f32.mrf.mxu0
  %v96 = vpop.f32.mrf.mxu0
  %v97 = vpop.f32.mrf.mxu0
  %98 = vdwg.mxu0
  %v99 = vmax.f32 %v94, 0.0
  %v100 = vpack.c.bf16 %v99, %v99
  %v101 = vlaneseq
  %v102 = vshrl.u32 %v101, 7
  %v103 = vsub.s32 0, %v102
  %v104 = vrot.slane %v36, %v103
  %v109 = vunpack.c.l.b16 %v31
  %v110 = vunpack.c.l.b16 %v32
  %v111 = vunpack.c.l.b16 %v33
  %v112 = vunpack.c.l.b16 %v34
  %v113 = vpack.c.b16 %v110, %v109
  %v114 = vpack.c.b16 %v112, %v111
  %v118 = vsel %vm55, %v100, 0
  %120 = vmatprep.subr.bf16.mxu0 0
  %121 = vmatpush1.bf16.msra.mxu0 0
  %122 = vmatprep.subr.bf16.mxu0 0
  %123 = vmatpush1.bf16.msra.mxu0 0
  %124 = vmatprep.subr.bf16.mxu0 0
  %125 = vmatpush1.bf16.msra.mxu0 0
  %126 = vmatprep.subr.bf16.mxu0 0
  %127 = vmatpush1.bf16.msra.mxu0 0
  %128 = vmatprep.subr.bf16.mxu0 0
  %129 = vmatpush1.bf16.msra.mxu0 0
  %130 = vmatprep.subr.bf16.mxu0 0
  %131 = vmatpush1.bf16.msra.mxu0 0
  %132 = vmatprep.subr.bf16.mxu0 0
  %133 = vmatpush1.bf16.msra.mxu0 %v114
  %134 = vmatprep.subr.bf16.mxu0 0
  %135 = vmatpush1.bf16.msra.mxu0 %v113
  %136 = vmatprep.subr.bf16.mxu0 0
  %137 = vmatpush2.bf16.msra.mxu0 0
  %138 = vmatprep.subr.bf16.mxu0 0
  %139 = vmatpush2.bf16.msra.mxu0 0
  %140 = vmatprep.subr.bf16.mxu0 0
  %141 = vmatpush2.bf16.msra.mxu0 0
  %142 = vmatprep.subr.bf16.mxu0 0
  %143 = vmatpush2.bf16.msra.mxu0 0
  %144 = vmatprep.subr.bf16.mxu0 0
  %145 = vmatpush2.bf16.msra.mxu0 0
  %146 = vmatprep.subr.bf16.mxu0 0
  %147 = vmatpush2.bf16.msra.mxu0 0
  %148 = vmatprep.subr.bf16.mxu0 0
  %149 = vmatpush2.bf16.msra.mxu0 0
  %150 = vmatprep.subr.bf16.mxu0 0
  %151 = vmatpush2.bf16.msra.mxu0 0
  %152 = vmatprep.mubr.bf16.mxu0 0
  %153 = vmatmul.mubr.bf16.gmra.mxu0 %v118
  %v154 = vpop.f32.mrf.mxu0
  %v155 = vadd.f32 %v104, %v154
  %v156 = vpop.f32.mrf.mxu0
  %v157 = vpop.f32.mrf.mxu0
  %v158 = vpop.f32.mrf.mxu0
  %159 = vdwg.mxu0
  %v160 = vmax.f32 %v155, 0.0
  %v161 = vlaneseq
  %v162 = vshrl.u32 %v161, 7
  %v163 = vsub.s32 0, %v162
  %v164 = vrot.slane %v37, %v163
  %v165 = vmul.f32 %v160, %v164
  %vm166 = vcmask 254976
  %v167 = vsel %vm166, %v165, 0.0
  %168 = vadd.xlane.f32.xlu0 %v167
  %v169 = vpop.xlane.xlu0 %168
  %v170 = vlaneseq
  %v171 = vshrl.u32 %v170, 7
  %v172 = vsub.s32 0, %v171
  %v173 = vrot.slane %v38, %v172
  %v174 = vadd.f32 %v169, %v173
  %vm175 = vcmask 1024
  %176 = vst.msk [vmem:[%s4] sm:$0x3] %vm175, %v174
  // Predicated region
  $region18: #{tpu_custom_call.1} parent=0 // pred_check
    _
  $region19: #{tpu_custom_call.1} parent=0 // pred_check_branch
    %178 = sbr.rel (0) target = $region21
  $region20: #{tpu_custom_call.1} parent=0 // pred_region
    _
  $region21: #{tpu_custom_call.1} parent=0 // pred_fallthru
    _
  // Predicated region
  $region22: #{tpu_custom_call.1} parent=0 // pred_check
    _
  $region23: #{tpu_custom_call.1} parent=0 // pred_check_branch
    %180 = sbr.rel (0) target = $region25
  $region24: #{tpu_custom_call.1} parent=0 // pred_region
    _
  $region25: #{tpu_custom_call.1} parent=0 // pred_fallthru
    _

</llo_original>
